<compile_context>
chip_gen: v5e
topology: v5e:2x2
jax: 0.10.0
libtpu: 0.0.40
codegen_flags: <defaults>
</compile_context>

<pallas_src>
import jax
import jax.numpy as jnp
from jax.experimental import pallas as pl
from jax.experimental.pallas import tpu as pltpu

LANE = 128          # pad every feature/action dim to one full vreg lane width
NEG_BIG = -1e30     # bias for padded action lanes: exp(logit - m) underflows to 0


def _mlp_kernel(x_ref, w1_ref, w23_ref, b_ref, out_ref):
    x = x_ref[...]                                                   # (TB, n_states)
    b1 = b_ref[0:1, :]                                               # (1, 128)
    b2 = b_ref[1:2, :]
    b3 = b_ref[2:3, :]                                               # NEG_BIG in pad lanes

    # lin1 + ReLU -> (TB, 128); padded lanes: relu(0 + 0) == 0
    h1 = jnp.dot(x, w1_ref[...], preferred_element_type=jnp.float32) + b1
    h1 = jnp.maximum(h1, 0.0)

    # lin2 + ReLU -> (TB, 128); padded lanes stay exactly 0
    h2 = jnp.dot(h1, w23_ref[0], preferred_element_type=jnp.float32) + b2
    h2 = jnp.maximum(h2, 0.0)

    # final_lin + Softmax(dim=1) over the lane-dense 128-wide row.
    # Padded action lanes have bias NEG_BIG -> exp underflows to exactly 0,
    # so the full-row softmax equals softmax over the real n_actions.
    logits = jnp.dot(h2, w23_ref[1], preferred_element_type=jnp.float32) + b3
    m = jnp.max(logits, axis=1, keepdims=True)                       # stable
    e = jnp.exp(logits - m)
    denom = jnp.sum(e, axis=1, keepdims=True)
    out_ref[...] = e / denom                                         # exact: log-prob parity


def network_forward(x, params, *, max_block_b=1024):
    """x: (B, n_states) float32. params: output of init_params()."""
    p = params["padded"]
    n_actions = params["raw"]["w3"].shape[1]                         # static shape
    B, n_states = x.shape

    if B <= max_block_b:
        # Single grid step: full-extent blocks, no batch padding, no pipeline
        # overhead; weights DMA'd once on one TC.
        block_b, b_pad = B, B
    else:
        block_b = max_block_b                                        # fills 256-wide MXU M dim
        b_pad = block_b * pl.cdiv(B, block_b)
        if b_pad != B:
            x = jnp.pad(x, ((0, b_pad - B), (0, 0)))
    grid_b = b_pad // block_b

    # Weights: constant block index across the batch grid -> VMEM-resident,
    # DMA'd from HBM only once for the whole call.
    wspec2 = lambda a: pl.BlockSpec(a.shape, lambda i: (0, 0))
    wspec3 = lambda a: pl.BlockSpec(a.shape, lambda i: (0, 0, 0))

    out = pl.pallas_call(
        _mlp_kernel,
        out_shape=jax.ShapeDtypeStruct((b_pad, LANE), jnp.float32),
        grid=(grid_b,),
        in_specs=[
            pl.BlockSpec((block_b, n_states), lambda i: (i, 0)),     # x tile
            wspec2(p["w1"]),                                         # (n_states, 128)
            wspec3(p["w23"]),                                        # (2, 128, 128)
            wspec2(p["b"]),                                          # (3, 128)
        ],
        out_specs=pl.BlockSpec((block_b, LANE), lambda i: (i, 0)),   # lane-dense
        compiler_params=pltpu.CompilerParams(
            # Megacore only pays off once each core gets >= ~1k rows; below
            # that the duplicated weight DMA beats the compute saved.
            dimension_semantics=("parallel",) if grid_b >= 2 else ("arbitrary",),
        ),
    )(x, p["w1"], p["w23"], p["b"])

    # TODO(synk): downstream samplers can consume the padded (B, 128) slab
    # directly (or a bf16 cast of it) to skip this HBM->HBM slice.
    return out[:B, :n_actions]


def init_params(key, n_states, n_actions):
    """Torch-like nn.Linear init (U(-1/sqrt(fan_in), 1/sqrt(fan_in))).
    Weights stored as (in_features, out_features); padded copies to 128 lanes,
    with w2/w3 stacked and b1/b2/b3 stacked to minimize input streams."""
    ks = jax.random.split(key, 6)

    def lin(kw, kb, fan_in, fan_out):
        bound = 1.0 / jnp.sqrt(jnp.float32(fan_in))
        w = jax.random.uniform(kw, (fan_in, fan_out), jnp.float32, -bound, bound)
        b = jax.random.uniform(kb, (fan_out,), jnp.float32, -bound, bound)
        return w, b

    w1, b1 = lin(ks[0], ks[1], n_states, 16)
    w2, b2 = lin(ks[2], ks[3], 16, 24)
    w3, b3 = lin(ks[4], ks[5], 24, n_actions)

    def pad_w(w, rows, cols):
        return jnp.zeros((rows, cols), jnp.float32).at[: w.shape[0], : w.shape[1]].set(w)

    def pad_b(b, cols, fill=0.0):
        return jnp.full((cols,), fill, jnp.float32).at[: b.shape[0]].set(b)

    padded = {
        "w1": pad_w(w1, n_states, LANE),
        "w23": jnp.stack([pad_w(w2, LANE, LANE), pad_w(w3, LANE, LANE)]),
        "b": jnp.stack([pad_b(b1, LANE), pad_b(b2, LANE), pad_b(b3, LANE, fill=NEG_BIG)]),
    }
    raw = {"w1": w1, "b1": b1, "w2": w2, "b2": b2, "w3": w3, "b3": b3}
    return {"padded": padded, "raw": raw}


def reference_forward(x, params):
    r = params["raw"]
    h1 = jax.nn.relu(x @ r["w1"] + r["b1"])
    h2 = jax.nn.relu(h1 @ r["w2"] + r["b2"])
    return jax.nn.softmax(h2 @ r["w3"] + r["b3"], axis=1)


if __name__ == "__main__":
    key = jax.random.PRNGKey(0)
    k_x, k_p = jax.random.split(key)

    batch = 256       # batch many env steps per call to amortize launch/DMA cost
    n_states = 4      # e.g. CartPole observation dim
    n_actions = 2     # e.g. CartPole action dim

    x = jax.random.normal(k_x, (batch, n_states), jnp.float32)
    params = init_params(k_p, n_states, n_actions)

    fwd = jax.jit(network_forward)
    out = jax.block_until_ready(fwd(x, params))

    # sanity: shape, softmax rows sum to 1 (exact divide), and match a
    # pure-JAX reference of the unpadded network.
    assert out.shape == (batch, n_actions)
    assert jnp.allclose(jnp.sum(out, axis=1), 1.0, atol=1e-4)
    ref = reference_forward(x, params)
    assert jnp.allclose(out, ref, atol=2e-3, rtol=2e-3)

    print("KERNEL_OK")
</pallas_src>

<mosaic_0001>
module attributes {stable_mosaic.version = 11 : i64} {
  func.func @_mlp_kernel(%arg0: i32, %arg1: memref<256x4xf32, #tpu.memory_space<vmem>>, %arg2: memref<4x128xf32, #tpu.memory_space<vmem>>, %arg3: memref<2x128x128xf32, #tpu.memory_space<vmem>>, %arg4: memref<3x128xf32, #tpu.memory_space<vmem>>, %arg5: memref<256x128xf32, #tpu.memory_space<vmem>>) attributes {dimension_semantics = [#tpu.dimension_semantics<arbitrary>], iteration_bounds = array<i64: 1>, scalar_prefetch = 0 : i64, scratch_operands = 0 : i64, tpu.core_type = #tpu.core_type<tc>, window_params = [{transform_indices = @transform_0, window_bounds = array<i64: 256, 4>}, {pipeline_mode = #tpu.pipeline_mode<synchronous>, transform_indices = @transform_1, window_bounds = array<i64: 4, 128>}, {pipeline_mode = #tpu.pipeline_mode<synchronous>, transform_indices = @transform_2, window_bounds = array<i64: 2, 128, 128>}, {pipeline_mode = #tpu.pipeline_mode<synchronous>, transform_indices = @transform_3, window_bounds = array<i64: 3, 128>}, {transform_indices = @transform_4, window_bounds = array<i64: 256, 128>}]} {
    %c0 = arith.constant 0 : index
    %c0_0 = arith.constant 0 : index
    %0 = vector.load %arg1[%c0, %c0_0] : memref<256x4xf32, #tpu.memory_space<vmem>>, vector<256x4xf32>
    %c0_1 = arith.constant 0 : index
    %c0_2 = arith.constant 0 : index
    %1 = vector.load %arg4[%c0_1, %c0_2] : memref<3x128xf32, #tpu.memory_space<vmem>>, vector<1x128xf32>
    %c1 = arith.constant 1 : index
    %c0_3 = arith.constant 0 : index
    %2 = vector.load %arg4[%c1, %c0_3] : memref<3x128xf32, #tpu.memory_space<vmem>>, vector<1x128xf32>
    %c2 = arith.constant 2 : index
    %c0_4 = arith.constant 0 : index
    %3 = vector.load %arg4[%c2, %c0_4] : memref<3x128xf32, #tpu.memory_space<vmem>>, vector<1x128xf32>
    %c0_5 = arith.constant 0 : index
    %c0_6 = arith.constant 0 : index
    %4 = vector.load %arg2[%c0_5, %c0_6] : memref<4x128xf32, #tpu.memory_space<vmem>>, vector<4x128xf32>
    %cst = arith.constant dense<0.000000e+00> : vector<256x128xf32>
    %5 = tpu.matmul %0, %4, %cst {dimension_numbers = #tpu.dot_dimension_numbers<[1], [0], [0], [1], [0, 0, 1, 1], [], []>} : vector<256x4xf32>, vector<4x128xf32>, vector<256x128xf32> -> vector<256x128xf32>
    %6 = vector.broadcast %1 : vector<1x128xf32> to vector<256x128xf32>
    %7 = arith.addf %5, %6 : vector<256x128xf32>
    %cst_7 = arith.constant 0.000000e+00 : f32
    %8 = vector.broadcast %cst_7 : f32 to vector<256x128xf32>
    %9 = arith.maximumf %7, %8 : vector<256x128xf32>
    %c0_8 = arith.constant 0 : index
    %c0_9 = arith.constant 0 : index
    %c0_10 = arith.constant 0 : index
    %10 = vector.load %arg3[%c0_8, %c0_9, %c0_10] : memref<2x128x128xf32, #tpu.memory_space<vmem>>, vector<1x128x128xf32>
    %11 = vector.shape_cast %10 : vector<1x128x128xf32> to vector<128x128xf32>
    %cst_11 = arith.constant dense<0.000000e+00> : vector<256x128xf32>
    %12 = tpu.matmul %9, %11, %cst_11 {dimension_numbers = #tpu.dot_dimension_numbers<[1], [0], [0], [1], [0, 0, 1, 1], [], []>} : vector<256x128xf32>, vector<128x128xf32>, vector<256x128xf32> -> vector<256x128xf32>
    %13 = vector.broadcast %2 : vector<1x128xf32> to vector<256x128xf32>
    %14 = arith.addf %12, %13 : vector<256x128xf32>
    %cst_12 = arith.constant 0.000000e+00 : f32
    %15 = vector.broadcast %cst_12 : f32 to vector<256x128xf32>
    %16 = arith.maximumf %14, %15 : vector<256x128xf32>
    %c1_13 = arith.constant 1 : index
    %c0_14 = arith.constant 0 : index
    %c0_15 = arith.constant 0 : index
    %17 = vector.load %arg3[%c1_13, %c0_14, %c0_15] : memref<2x128x128xf32, #tpu.memory_space<vmem>>, vector<1x128x128xf32>
    %18 = vector.shape_cast %17 : vector<1x128x128xf32> to vector<128x128xf32>
    %cst_16 = arith.constant dense<0.000000e+00> : vector<256x128xf32>
    %19 = tpu.matmul %16, %18, %cst_16 {dimension_numbers = #tpu.dot_dimension_numbers<[1], [0], [0], [1], [0, 0, 1, 1], [], []>} : vector<256x128xf32>, vector<128x128xf32>, vector<256x128xf32> -> vector<256x128xf32>
    %20 = vector.broadcast %3 : vector<1x128xf32> to vector<256x128xf32>
    %21 = arith.addf %19, %20 : vector<256x128xf32>
    %cst_17 = arith.constant dense<0xFF800000> : vector<256xf32>
    %22 = vector.multi_reduction <maximumf>, %21, %cst_17 [1] : vector<256x128xf32> to vector<256xf32>
    %23 = vector.shape_cast %22 : vector<256xf32> to vector<256x1xf32>
    %24 = vector.broadcast %23 : vector<256x1xf32> to vector<256x128xf32>
    %25 = arith.subf %21, %24 : vector<256x128xf32>
    %26 = math.exp %25 : vector<256x128xf32>
    %cst_18 = arith.constant dense<0.000000e+00> : vector<256xf32>
    %27 = vector.multi_reduction <add>, %26, %cst_18 [1] : vector<256x128xf32> to vector<256xf32>
    %28 = vector.shape_cast %27 : vector<256xf32> to vector<256x1xf32>
    %29 = vector.broadcast %28 : vector<256x1xf32> to vector<256x128xf32>
    %30 = arith.divf %26, %29 : vector<256x128xf32>
    %c0_19 = arith.constant 0 : index
    %c0_20 = arith.constant 0 : index
    %31 = vector.load %arg5[%c0_19, %c0_20] : memref<256x128xf32, #tpu.memory_space<vmem>>, vector<256x128xf32>
    tpu.vector_store %arg5[%c0_19, %c0_20], %30 {strides = array<i32>} : memref<256x128xf32, #tpu.memory_space<vmem>>, vector<256x128xf32>,
    return
  }
  func.func @transform_0(%arg0: i32) -> (i32, i32) {
    %c0_i32 = arith.constant 0 : i32
    %c0_i32_0 = arith.constant 0 : i32
    return %arg0, %c0_i32 : i32, i32
  }
  func.func @transform_1(%arg0: i32) -> (i32, i32) {
    %c0_i32 = arith.constant 0 : i32
    %c0_i32_0 = arith.constant 0 : i32
    %c0_i32_1 = arith.constant 0 : i32
    return %c0_i32, %c0_i32_0 : i32, i32
  }
  func.func @transform_2(%arg0: i32) -> (i32, i32, i32) {
    %c0_i32 = arith.constant 0 : i32
    %c0_i32_0 = arith.constant 0 : i32
    %c0_i32_1 = arith.constant 0 : i32
    %c0_i32_2 = arith.constant 0 : i32
    return %c0_i32, %c0_i32_0, %c0_i32_1 : i32, i32, i32
  }
  func.func @transform_3(%arg0: i32) -> (i32, i32) {
    %c0_i32 = arith.constant 0 : i32
    %c0_i32_0 = arith.constant 0 : i32
    %c0_i32_1 = arith.constant 0 : i32
    return %c0_i32, %c0_i32_0 : i32, i32
  }
  func.func @transform_4(%arg0: i32) -> (i32, i32) {
    %c0_i32 = arith.constant 0 : i32
    %c0_i32_0 = arith.constant 0 : i32
    return %arg0, %c0_i32 : i32, i32
  }
}

</mosaic_0001>

<llo_original>
// kernel: network_forward.1
$region0: #{network_forward.1}
  #allocation0 [shape = 'u32[]', space=smem, size = 0x4, offset = 0x4, fixed_abs, tag = 'smem constant byte address 0x4 - core index']
  #allocation1 [shape = 'u32[72,128]{1,0:T(1,128)}', space=vmem, size = 0x9000, scoped, tag = 'internal scratch']
  %s0 = inlined_call_operand.vmem [shape: f32[256,4], index: 0, kind: input, shape index: {}]
  %s1 = inlined_call_operand.vmem [shape: f32[4,128], index: 1, kind: input, shape index: {}]
  %s2 = inlined_call_operand.vmem [shape: f32[2,128,128], index: 2, kind: input, shape index: {}]
  %s3 = inlined_call_operand.vmem [shape: f32[3,128], index: 3, kind: input, shape index: {}]
  %s4 = inlined_call_operand.vmem [shape: f32[256,128], index: 4, kind: output, shape index: {}]
  %s5 = sld [smem:[#allocation0]]
  $region26: #{network_forward.1} parent=0
    _
  %s7 = ssub.s32 1, %s5
  %s8 = scalar_select 0, %s7, %s5
  // Predicated region
  $region2: #{network_forward.1} parent=0 // pred_check
    _
  $region3: #{network_forward.1} parent=0 // pred_check_branch
    %10 = sbr.rel (0) target = $region5
  $region4: #{network_forward.1} parent=0 // pred_region
    _
  $region5: #{network_forward.1} parent=0 // pred_fallthru
    _
  // Predicated region
  $region6: #{network_forward.1} parent=0 // pred_check
    _
  $region7: #{network_forward.1} parent=0 // pred_check_branch
    %12 = sbr.rel (0) target = $region9
  $region8: #{network_forward.1} parent=0 // pred_region
    _
  $region9: #{network_forward.1} parent=0 // pred_fallthru
    _
  // Predicated region
  $region10: #{network_forward.1} parent=0 // pred_check
    _
  $region11: #{network_forward.1} parent=0 // pred_check_branch
    %14 = sbr.rel (0) target = $region13
  $region12: #{network_forward.1} parent=0 // pred_region
    _
  $region13: #{network_forward.1} parent=0 // pred_fallthru
    _
  // Predicated region
  $region14: #{network_forward.1} parent=0 // pred_check
    _
  $region15: #{network_forward.1} parent=0 // pred_check_branch
    %16 = sbr.rel (0) target = $region17
  $region16: #{network_forward.1} parent=0 // pred_region
    _
  $region17: #{network_forward.1} parent=0 // pred_fallthru
    _
  %v17 = vld [vmem:[%s0] sm:$0xff]
  %v18 = vld [vmem:[%s0 + $0x8] sm:$0xff]
  %v19 = vld [vmem:[%s0 + $0x10] sm:$0xff]
  %v20 = vld [vmem:[%s0 + $0x18] sm:$0xff]
  %v21 = vld [vmem:[%s0 + $0x20] sm:$0xff]
  %v22 = vld [vmem:[%s0 + $0x28] sm:$0xff]
  %v23 = vld [vmem:[%s0 + $0x30] sm:$0xff]
  %v24 = vld [vmem:[%s0 + $0x38] sm:$0xff]
  %v25 = vld [vmem:[%s0 + $0x40] sm:$0xff]
  %v26 = vld [vmem:[%s0 + $0x48] sm:$0xff]
  %v27 = vld [vmem:[%s0 + $0x50] sm:$0xff]
  %v28 = vld [vmem:[%s0 + $0x58] sm:$0xff]
  %v29 = vld [vmem:[%s0 + $0x60] sm:$0xff]
  %v30 = vld [vmem:[%s0 + $0x68] sm:$0xff]
  %v31 = vld [vmem:[%s0 + $0x70] sm:$0xff]
  %v32 = vld [vmem:[%s0 + $0x78] sm:$0xff]
  %v33 = vld [vmem:[%s0 + $0x80] sm:$0xff]
  %v34 = vld [vmem:[%s0 + $0x88] sm:$0xff]
  %v35 = vld [vmem:[%s0 + $0x90] sm:$0xff]
  %v36 = vld [vmem:[%s0 + $0x98] sm:$0xff]
  %v37 = vld [vmem:[%s0 + $0xa0] sm:$0xff]
  %v38 = vld [vmem:[%s0 + $0xa8] sm:$0xff]
  %v39 = vld [vmem:[%s0 + $0xb0] sm:$0xff]
  %v40 = vld [vmem:[%s0 + $0xb8] sm:$0xff]
  %v41 = vld [vmem:[%s0 + $0xc0] sm:$0xff]
  %v42 = vld [vmem:[%s0 + $0xc8] sm:$0xff]
  %v43 = vld [vmem:[%s0 + $0xd0] sm:$0xff]
  %v44 = vld [vmem:[%s0 + $0xd8] sm:$0xff]
  %v45 = vld [vmem:[%s0 + $0xe0] sm:$0xff]
  %v46 = vld [vmem:[%s0 + $0xe8] sm:$0xff]
  %v47 = vld [vmem:[%s0 + $0xf0] sm:$0xff]
  %v48 = vld [vmem:[%s0 + $0xf8] sm:$0xff]
  %v49 = vld [vmem:[%s3] sm:$0x1]
  %v50 = vld [vmem:[%s3 + $0x1] sm:$0x1]
  %v51 = vld [vmem:[%s3 + $0x2] sm:$0x1]
  %v52 = vld [vmem:[%s1] sm:$0xf]
  %v53 = vperm.slane %v49, 0
  %vm54 = vcmask 31744
  %v56 = vsel %vm54, %v17, 0
  %v59 = vsel %vm54, %v18, 0
  %v62 = vsel %vm54, %v19, 0
  %v65 = vsel %vm54, %v20, 0
  %v68 = vsel %vm54, %v21, 0
  %v71 = vsel %vm54, %v22, 0
  %v74 = vsel %vm54, %v23, 0
  %v77 = vsel %vm54, %v24, 0
  %v80 = vsel %vm54, %v25, 0
  %v83 = vsel %vm54, %v26, 0
  %v86 = vsel %vm54, %v27, 0
  %v89 = vsel %vm54, %v28, 0
  %v92 = vsel %vm54, %v29, 0
  %v95 = vsel %vm54, %v30, 0
  %v98 = vsel %vm54, %v31, 0
  %v101 = vsel %vm54, %v32, 0
  %v104 = vsel %vm54, %v33, 0
  %v107 = vsel %vm54, %v34, 0
  %v110 = vsel %vm54, %v35, 0
  %v113 = vsel %vm54, %v36, 0
  %v116 = vsel %vm54, %v37, 0
  %v119 = vsel %vm54, %v38, 0
  %v122 = vsel %vm54, %v39, 0
  %v125 = vsel %vm54, %v40, 0
  %v128 = vsel %vm54, %v41, 0
  %v131 = vsel %vm54, %v42, 0
  %v134 = vsel %vm54, %v43, 0
  %v137 = vsel %vm54, %v44, 0
  %v140 = vsel %vm54, %v45, 0
  %v143 = vsel %vm54, %v46, 0
  %v146 = vsel %vm54, %v47, 0
  %v149 = vsel %vm54, %v48, 0
  %vm151 = vcmask 1043456
  %v153 = vsel %vm151, %v52, 0
  %155 = vmatpush.msra.mxu0 0.0
  %156 = vmatpush.msra.mxu0 0.0
  %157 = vmatpush.msra.mxu0 0.0
  %158 = vmatpush.msra.mxu0 0.0
  %159 = vmatpush.msra.mxu0 0.0
  %160 = vmatpush.msra.mxu0 0.0
  %161 = vmatpush.msra.mxu0 0.0
  %162 = vmatpush.msra.mxu0 0.0
  %163 = vmatpush.msra.mxu0 0.0
  %164 = vmatpush.msra.mxu0 0.0
  %165 = vmatpush.msra.mxu0 0.0
  %166 = vmatpush.msra.mxu0 0.0
  %167 = vmatpush.msra.mxu0 0.0
  %168 = vmatpush.msra.mxu0 0.0
  %169 = vmatpush.msra.mxu0 0.0
  %170 = vmatpush.msra.mxu0 %v153
  %171 = vmatmul.f32.gmra.mxu0 %v56
  %v172 = vpop.f32.mrf.mxu0
  %v173 = vadd.f32 %v53, %v172
  %174 = vmatmul.f32.gmra.mxu0 %v59
  %v175 = vpop.f32.mrf.mxu0
  %v176 = vadd.f32 %v53, %v175
  %177 = vmatmul.f32.gmra.mxu0 %v62
  %v178 = vpop.f32.mrf.mxu0
  %v179 = vadd.f32 %v53, %v178
  %180 = vmatmul.f32.gmra.mxu0 %v65
  %v181 = vpop.f32.mrf.mxu0
  %v182 = vadd.f32 %v53, %v181
  %183 = vmatmul.f32.gmra.mxu0 %v68
  %v184 = vpop.f32.mrf.mxu0
  %v185 = vadd.f32 %v53, %v184
  %186 = vmatmul.f32.gmra.mxu0 %v71
  %v187 = vpop.f32.mrf.mxu0
  %v188 = vadd.f32 %v53, %v187
  %189 = vmatmul.f32.gmra.mxu0 %v74
  %v190 = vpop.f32.mrf.mxu0
  %v191 = vadd.f32 %v53, %v190
  %192 = vmatmul.f32.gmra.mxu0 %v77
  %v193 = vpop.f32.mrf.mxu0
  %v194 = vadd.f32 %v53, %v193
  %195 = vmatmul.f32.gmra.mxu0 %v80
  %v196 = vpop.f32.mrf.mxu0
  %v197 = vadd.f32 %v53, %v196
  %198 = vmatmul.f32.gmra.mxu0 %v83
  %v199 = vpop.f32.mrf.mxu0
  %v200 = vadd.f32 %v53, %v199
  %201 = vmatmul.f32.gmra.mxu0 %v86
  %v202 = vpop.f32.mrf.mxu0
  %v203 = vadd.f32 %v53, %v202
  %204 = vmatmul.f32.gmra.mxu0 %v89
  %v205 = vpop.f32.mrf.mxu0
  %v206 = vadd.f32 %v53, %v205
  %207 = vmatmul.f32.gmra.mxu0 %v92
  %v208 = vpop.f32.mrf.mxu0
  %v209 = vadd.f32 %v53, %v208
  %210 = vmatmul.f32.gmra.mxu0 %v95
  %v211 = vpop.f32.mrf.mxu0
  %v212 = vadd.f32 %v53, %v211
  %213 = vmatmul.f32.gmra.mxu0 %v98
  %v214 = vpop.f32.mrf.mxu0
  %v215 = vadd.f32 %v53, %v214
  %216 = vmatmul.f32.gmra.mxu0 %v101
  %v217 = vpop.f32.mrf.mxu0
  %v218 = vadd.f32 %v53, %v217
  %219 = vmatmul.f32.gmra.mxu0 %v104
  %v220 = vpop.f32.mrf.mxu0
  %v221 = vadd.f32 %v53, %v220
  %222 = vmatmul.f32.gmra.mxu0 %v107
  %v223 = vpop.f32.mrf.mxu0
  %v224 = vadd.f32 %v53, %v223
  %225 = vmatmul.f32.gmra.mxu0 %v110
  %v226 = vpop.f32.mrf.mxu0
  %v227 = vadd.f32 %v53, %v226
  %228 = vmatmul.f32.gmra.mxu0 %v113
  %v229 = vpop.f32.mrf.mxu0
  %v230 = vadd.f32 %v53, %v229
  %231 = vmatmul.f32.gmra.mxu0 %v116
  %v232 = vpop.f32.mrf.mxu0
  %v233 = vadd.f32 %v53, %v232
  %234 = vmatmul.f32.gmra.mxu0 %v119
  %v235 = vpop.f32.mrf.mxu0
  %v236 = vadd.f32 %v53, %v235
  %237 = vmatmul.f32.gmra.mxu0 %v122
  %v238 = vpop.f32.mrf.mxu0
  %v239 = vadd.f32 %v53, %v238
  %240 = vmatmul.f32.gmra.mxu0 %v125
  %v241 = vpop.f32.mrf.mxu0
  %v242 = vadd.f32 %v53, %v241
  %243 = vmatmul.f32.gmra.mxu0 %v128
  %v244 = vpop.f32.mrf.mxu0
  %v245 = vadd.f32 %v53, %v244
  %246 = vmatmul.f32.gmra.mxu0 %v131
  %v247 = vpop.f32.mrf.mxu0
  %v248 = vadd.f32 %v53, %v247
  %249 = vmatmul.f32.gmra.mxu0 %v134
  %v250 = vpop.f32.mrf.mxu0
  %v251 = vadd.f32 %v53, %v250
  %252 = vmatmul.f32.gmra.mxu0 %v137
  %v253 = vpop.f32.mrf.mxu0
  %v254 = vadd.f32 %v53, %v253
  %255 = vmatmul.f32.gmra.mxu0 %v140
  %v256 = vpop.f32.mrf.mxu0
  %v257 = vadd.f32 %v53, %v256
  %258 = vmatmul.f32.gmra.mxu0 %v143
  %v259 = vpop.f32.mrf.mxu0
  %v260 = vadd.f32 %v53, %v259
  %261 = vmatmul.f32.gmra.mxu0 %v146
  %v262 = vpop.f32.mrf.mxu0
  %v263 = vadd.f32 %v53, %v262
  %264 = vmatmul.f32.gmra.mxu0 %v149
  %v265 = vpop.f32.mrf.mxu0
  %v266 = vadd.f32 %v53, %v265
  %267 = vdwg.mxu0
  %v268 = vmax.f32 %v173, 0.0
  %v269 = vmax.f32 %v176, 0.0
  %v270 = vmax.f32 %v179, 0.0
  %v271 = vmax.f32 %v182, 0.0
  %v272 = vmax.f32 %v185, 0.0
  %v273 = vmax.f32 %v188, 0.0
  %v274 = vmax.f32 %v191, 0.0
  %v275 = vmax.f32 %v194, 0.0
  %v276 = vmax.f32 %v197, 0.0
  %v277 = vmax.f32 %v200, 0.0
  %v278 = vmax.f32 %v203, 0.0
  %v279 = vmax.f32 %v206, 0.0
  %v280 = vmax.f32 %v209, 0.0
  %v281 = vmax.f32 %v212, 0.0
  %v282 = vmax.f32 %v215, 0.0
  %v283 = vmax.f32 %v218, 0.0
  %v284 = vmax.f32 %v221, 0.0
  %v285 = vmax.f32 %v224, 0.0
  %v286 = vmax.f32 %v227, 0.0
  %v287 = vmax.f32 %v230, 0.0
  %v288 = vmax.f32 %v233, 0.0
  %v289 = vmax.f32 %v236, 0.0
  %v290 = vmax.f32 %v239, 0.0
  %v291 = vmax.f32 %v242, 0.0
  %v292 = vmax.f32 %v245, 0.0
  %v293 = vmax.f32 %v248, 0.0
  %v294 = vmax.f32 %v251, 0.0
  %v295 = vmax.f32 %v254, 0.0
  %v296 = vmax.f32 %v257, 0.0
  %v297 = vmax.f32 %v260, 0.0
  %v298 = vmax.f32 %v263, 0.0
  %v299 = vmax.f32 %v266, 0.0
  %v300 = vld [vmem:[%s2] sm:$0xff]
  %v301 = vld [vmem:[%s2 + $0x8] sm:$0xff]
  %v302 = vld [vmem:[%s2 + $0x10] sm:$0xff]
  %v303 = vld [vmem:[%s2 + $0x18] sm:$0xff]
  %v304 = vld [vmem:[%s2 + $0x20] sm:$0xff]
  %v305 = vld [vmem:[%s2 + $0x28] sm:$0xff]
  %v306 = vld [vmem:[%s2 + $0x30] sm:$0xff]
  %v307 = vld [vmem:[%s2 + $0x38] sm:$0xff]
  %v308 = vld [vmem:[%s2 + $0x40] sm:$0xff]
  %v309 = vld [vmem:[%s2 + $0x48] sm:$0xff]
  %v310 = vld [vmem:[%s2 + $0x50] sm:$0xff]
  %v311 = vld [vmem:[%s2 + $0x58] sm:$0xff]
  %v312 = vld [vmem:[%s2 + $0x60] sm:$0xff]
  %v313 = vld [vmem:[%s2 + $0x68] sm:$0xff]
  %v314 = vld [vmem:[%s2 + $0x70] sm:$0xff]
  %v315 = vld [vmem:[%s2 + $0x78] sm:$0xff]
  %v316 = vperm.slane %v50, 0
  %317 = vmatpush.msra.mxu0 %v315
  %318 = vmatpush.msra.mxu0 %v314
  %319 = vmatpush.msra.mxu0 %v313
  %320 = vmatpush.msra.mxu0 %v312
  %321 = vmatpush.msra.mxu0 %v311
  %322 = vmatpush.msra.mxu0 %v310
  %323 = vmatpush.msra.mxu0 %v309
  %324 = vmatpush.msra.mxu0 %v308
  %325 = vmatpush.msra.mxu0 %v307
  %326 = vmatpush.msra.mxu0 %v306
  %327 = vmatpush.msra.mxu0 %v305
  %328 = vmatpush.msra.mxu0 %v304
  %329 = vmatpush.msra.mxu0 %v303
  %330 = vmatpush.msra.mxu0 %v302
  %331 = vmatpush.msra.mxu0 %v301
  %332 = vmatpush.msra.mxu0 %v300
  %333 = vmatmul.f32.gmra.mxu0 %v268
  %v334 = vpop.f32.mrf.mxu0
  %v335 = vadd.f32 %v316, %v334
  %336 = vmatmul.f32.gmra.mxu0 %v269
  %v337 = vpop.f32.mrf.mxu0
  %v338 = vadd.f32 %v316, %v337
  %339 = vmatmul.f32.gmra.mxu0 %v270
  %v340 = vpop.f32.mrf.mxu0
  %v341 = vadd.f32 %v316, %v340
  %342 = vmatmul.f32.gmra.mxu0 %v271
  %v343 = vpop.f32.mrf.mxu0
  %v344 = vadd.f32 %v316, %v343
  %345 = vmatmul.f32.gmra.mxu0 %v272
  %v346 = vpop.f32.mrf.mxu0
  %v347 = vadd.f32 %v316, %v346
  %348 = vmatmul.f32.gmra.mxu0 %v273
  %v349 = vpop.f32.mrf.mxu0
  %v350 = vadd.f32 %v316, %v349
  %351 = vmatmul.f32.gmra.mxu0 %v274
  %v352 = vpop.f32.mrf.mxu0
  %v353 = vadd.f32 %v316, %v352
  %354 = vmatmul.f32.gmra.mxu0 %v275
  %v355 = vpop.f32.mrf.mxu0
  %v356 = vadd.f32 %v316, %v355
  %357 = vmatmul.f32.gmra.mxu0 %v276
  %v358 = vpop.f32.mrf.mxu0
  %v359 = vadd.f32 %v316, %v358
  %360 = vmatmul.f32.gmra.mxu0 %v277
  %v361 = vpop.f32.mrf.mxu0
  %v362 = vadd.f32 %v316, %v361
  %363 = vmatmul.f32.gmra.mxu0 %v278
  %v364 = vpop.f32.mrf.mxu0
  %v365 = vadd.f32 %v316, %v364
  %366 = vmatmul.f32.gmra.mxu0 %v279
  %v367 = vpop.f32.mrf.mxu0
  %v368 = vadd.f32 %v316, %v367
  %369 = vmatmul.f32.gmra.mxu0 %v280
  %v370 = vpop.f32.mrf.mxu0
  %v371 = vadd.f32 %v316, %v370
  %372 = vmatmul.f32.gmra.mxu0 %v281
  %v373 = vpop.f32.mrf.mxu0
  %v374 = vadd.f32 %v316, %v373
  %375 = vmatmul.f32.gmra.mxu0 %v282
  %v376 = vpop.f32.mrf.mxu0
  %v377 = vadd.f32 %v316, %v376
  %378 = vmatmul.f32.gmra.mxu0 %v283
  %v379 = vpop.f32.mrf.mxu0
  %v380 = vadd.f32 %v316, %v379
  %381 = vmatmul.f32.gmra.mxu0 %v284
  %v382 = vpop.f32.mrf.mxu0
  %v383 = vadd.f32 %v316, %v382
  %384 = vmatmul.f32.gmra.mxu0 %v285
  %v385 = vpop.f32.mrf.mxu0
  %v386 = vadd.f32 %v316, %v385
  %387 = vmatmul.f32.gmra.mxu0 %v286
  %v388 = vpop.f32.mrf.mxu0
  %v389 = vadd.f32 %v316, %v388
  %390 = vmatmul.f32.gmra.mxu0 %v287
  %v391 = vpop.f32.mrf.mxu0
  %v392 = vadd.f32 %v316, %v391
  %393 = vmatmul.f32.gmra.mxu0 %v288
  %v394 = vpop.f32.mrf.mxu0
  %v395 = vadd.f32 %v316, %v394
  %396 = vmatmul.f32.gmra.mxu0 %v289
  %v397 = vpop.f32.mrf.mxu0
  %v398 = vadd.f32 %v316, %v397
  %399 = vmatmul.f32.gmra.mxu0 %v290
  %v400 = vpop.f32.mrf.mxu0
  %v401 = vadd.f32 %v316, %v400
  %402 = vmatmul.f32.gmra.mxu0 %v291
  %v403 = vpop.f32.mrf.mxu0
  %v404 = vadd.f32 %v316, %v403
  %405 = vmatmul.f32.gmra.mxu0 %v292
  %v406 = vpop.f32.mrf.mxu0
  %v407 = vadd.f32 %v316, %v406
  %408 = vmatmul.f32.gmra.mxu0 %v293
  %v409 = vpop.f32.mrf.mxu0
  %v410 = vadd.f32 %v316, %v409
  %411 = vmatmul.f32.gmra.mxu0 %v294
  %v412 = vpop.f32.mrf.mxu0
  %v413 = vadd.f32 %v316, %v412
  %414 = vmatmul.f32.gmra.mxu0 %v295
  %v415 = vpop.f32.mrf.mxu0
  %v416 = vadd.f32 %v316, %v415
  %417 = vmatmul.f32.gmra.mxu0 %v296
  %v418 = vpop.f32.mrf.mxu0
  %v419 = vadd.f32 %v316, %v418
  %420 = vmatmul.f32.gmra.mxu0 %v297
  %v421 = vpop.f32.mrf.mxu0
  %v422 = vadd.f32 %v316, %v421
  %423 = vmatmul.f32.gmra.mxu0 %v298
  %v424 = vpop.f32.mrf.mxu0
  %v425 = vadd.f32 %v316, %v424
  %426 = vmatmul.f32.gmra.mxu0 %v299
  %v427 = vpop.f32.mrf.mxu0
  %v428 = vadd.f32 %v316, %v427
  %429 = vdwg.mxu0
  %v430 = vmax.f32 %v335, 0.0
  %v431 = vmax.f32 %v338, 0.0
  %v432 = vmax.f32 %v341, 0.0
  %v433 = vmax.f32 %v344, 0.0
  %v434 = vmax.f32 %v347, 0.0
  %v435 = vmax.f32 %v350, 0.0
  %v436 = vmax.f32 %v353, 0.0
  %v437 = vmax.f32 %v356, 0.0
  %v438 = vmax.f32 %v359, 0.0
  %v439 = vmax.f32 %v362, 0.0
  %v440 = vmax.f32 %v365, 0.0
  %v441 = vmax.f32 %v368, 0.0
  %v442 = vmax.f32 %v371, 0.0
  %v443 = vmax.f32 %v374, 0.0
  %v444 = vmax.f32 %v377, 0.0
  %v445 = vmax.f32 %v380, 0.0
  %v446 = vmax.f32 %v383, 0.0
  %v447 = vmax.f32 %v386, 0.0
  %v448 = vmax.f32 %v389, 0.0
  %v449 = vmax.f32 %v392, 0.0
  %v450 = vmax.f32 %v395, 0.0
  %v451 = vmax.f32 %v398, 0.0
  %v452 = vmax.f32 %v401, 0.0
  %v453 = vmax.f32 %v404, 0.0
  %v454 = vmax.f32 %v407, 0.0
  %v455 = vmax.f32 %v410, 0.0
  %v456 = vmax.f32 %v413, 0.0
  %v457 = vmax.f32 %v416, 0.0
  %v458 = vmax.f32 %v419, 0.0
  %v459 = vmax.f32 %v422, 0.0
  %v460 = vmax.f32 %v425, 0.0
  %v461 = vmax.f32 %v428, 0.0
  %s462 = scalar_lea.vmem %s2, 128
  %v463 = vld [vmem:[%s462] sm:$0xff]
  %v464 = vld [vmem:[%s462 + $0x8] sm:$0xff]
  %v465 = vld [vmem:[%s462 + $0x10] sm:$0xff]
  %v466 = vld [vmem:[%s462 + $0x18] sm:$0xff]
  %v467 = vld [vmem:[%s462 + $0x20] sm:$0xff]
  %v468 = vld [vmem:[%s462 + $0x28] sm:$0xff]
  %v469 = vld [vmem:[%s462 + $0x30] sm:$0xff]
  %v470 = vld [vmem:[%s462 + $0x38] sm:$0xff]
  %v471 = vld [vmem:[%s462 + $0x40] sm:$0xff]
  %v472 = vld [vmem:[%s462 + $0x48] sm:$0xff]
  %v473 = vld [vmem:[%s462 + $0x50] sm:$0xff]
  %v474 = vld [vmem:[%s462 + $0x58] sm:$0xff]
  %v475 = vld [vmem:[%s462 + $0x60] sm:$0xff]
  %v476 = vld [vmem:[%s462 + $0x68] sm:$0xff]
  %v477 = vld [vmem:[%s462 + $0x70] sm:$0xff]
  %v478 = vld [vmem:[%s462 + $0x78] sm:$0xff]
  %v479 = vperm.slane %v51, 0
  %480 = vmatpush.msra.mxu0 %v478
  %481 = vmatpush.msra.mxu0 %v477
  %482 = vmatpush.msra.mxu0 %v476
  %483 = vmatpush.msra.mxu0 %v475
  %484 = vmatpush.msra.mxu0 %v474
  %485 = vmatpush.msra.mxu0 %v473
  %486 = vmatpush.msra.mxu0 %v472
  %487 = vmatpush.msra.mxu0 %v471
  %488 = vmatpush.msra.mxu0 %v470
  %489 = vmatpush.msra.mxu0 %v469
  %490 = vmatpush.msra.mxu0 %v468
  %491 = vmatpush.msra.mxu0 %v467
  %492 = vmatpush.msra.mxu0 %v466
  %493 = vmatpush.msra.mxu0 %v465
  %494 = vmatpush.msra.mxu0 %v464
  %495 = vmatpush.msra.mxu0 %v463
  %496 = vmatmul.f32.gmra.mxu0 %v430
  %v497 = vpop.f32.mrf.mxu0
  %v498 = vadd.f32 %v479, %v497
  %499 = vmatmul.f32.gmra.mxu0 %v431
  %v500 = vpop.f32.mrf.mxu0
  %v501 = vadd.f32 %v479, %v500
  %502 = vmatmul.f32.gmra.mxu0 %v432
  %v503 = vpop.f32.mrf.mxu0
  %v504 = vadd.f32 %v479, %v503
  %505 = vmatmul.f32.gmra.mxu0 %v433
  %v506 = vpop.f32.mrf.mxu0
  %v507 = vadd.f32 %v479, %v506
  %508 = vmatmul.f32.gmra.mxu0 %v434
  %v509 = vpop.f32.mrf.mxu0
  %v510 = vadd.f32 %v479, %v509
  %511 = vmatmul.f32.gmra.mxu0 %v435
  %v512 = vpop.f32.mrf.mxu0
  %v513 = vadd.f32 %v479, %v512
  %514 = vmatmul.f32.gmra.mxu0 %v436
  %v515 = vpop.f32.mrf.mxu0
  %v516 = vadd.f32 %v479, %v515
  %517 = vmatmul.f32.gmra.mxu0 %v437
  %v518 = vpop.f32.mrf.mxu0
  %v519 = vadd.f32 %v479, %v518
  %520 = vmatmul.f32.gmra.mxu0 %v438
  %v521 = vpop.f32.mrf.mxu0
  %v522 = vadd.f32 %v479, %v521
  %523 = vmatmul.f32.gmra.mxu0 %v439
  %v524 = vpop.f32.mrf.mxu0
  %v525 = vadd.f32 %v479, %v524
  %526 = vmatmul.f32.gmra.mxu0 %v440
  %v527 = vpop.f32.mrf.mxu0
  %v528 = vadd.f32 %v479, %v527
  %529 = vmatmul.f32.gmra.mxu0 %v441
  %v530 = vpop.f32.mrf.mxu0
  %v531 = vadd.f32 %v479, %v530
  %532 = vmatmul.f32.gmra.mxu0 %v442
  %v533 = vpop.f32.mrf.mxu0
  %v534 = vadd.f32 %v479, %v533
  %535 = vmatmul.f32.gmra.mxu0 %v443
  %v536 = vpop.f32.mrf.mxu0
  %v537 = vadd.f32 %v479, %v536
  %538 = vmatmul.f32.gmra.mxu0 %v444
  %v539 = vpop.f32.mrf.mxu0
  %v540 = vadd.f32 %v479, %v539
  %541 = vmatmul.f32.gmra.mxu0 %v445
  %v542 = vpop.f32.mrf.mxu0
  %v543 = vadd.f32 %v479, %v542
  %544 = vmatmul.f32.gmra.mxu0 %v446
  %v545 = vpop.f32.mrf.mxu0
  %v546 = vadd.f32 %v479, %v545
  %547 = vmatmul.f32.gmra.mxu0 %v447
  %v548 = vpop.f32.mrf.mxu0
  %v549 = vadd.f32 %v479, %v548
  %550 = vmatmul.f32.gmra.mxu0 %v448
  %v551 = vpop.f32.mrf.mxu0
  %v552 = vadd.f32 %v479, %v551
  %553 = vmatmul.f32.gmra.mxu0 %v449
  %v554 = vpop.f32.mrf.mxu0
  %v555 = vadd.f32 %v479, %v554
  %556 = vmatmul.f32.gmra.mxu0 %v450
  %v557 = vpop.f32.mrf.mxu0
  %v558 = vadd.f32 %v479, %v557
  %559 = vmatmul.f32.gmra.mxu0 %v451
  %v560 = vpop.f32.mrf.mxu0
  %v561 = vadd.f32 %v479, %v560
  %562 = vmatmul.f32.gmra.mxu0 %v452
  %v563 = vpop.f32.mrf.mxu0
  %v564 = vadd.f32 %v479, %v563
  %565 = vmatmul.f32.gmra.mxu0 %v453
  %v566 = vpop.f32.mrf.mxu0
  %v567 = vadd.f32 %v479, %v566
  %568 = vmatmul.f32.gmra.mxu0 %v454
  %v569 = vpop.f32.mrf.mxu0
  %v570 = vadd.f32 %v479, %v569
  %571 = vmatmul.f32.gmra.mxu0 %v455
  %v572 = vpop.f32.mrf.mxu0
  %v573 = vadd.f32 %v479, %v572
  %574 = vmatmul.f32.gmra.mxu0 %v456
  %v575 = vpop.f32.mrf.mxu0
  %v576 = vadd.f32 %v479, %v575
  %577 = vmatmul.f32.gmra.mxu0 %v457
  %v578 = vpop.f32.mrf.mxu0
  %v579 = vadd.f32 %v479, %v578
  %580 = vmatmul.f32.gmra.mxu0 %v458
  %v581 = vpop.f32.mrf.mxu0
  %v582 = vadd.f32 %v479, %v581
  %583 = vmatmul.f32.gmra.mxu0 %v459
  %v584 = vpop.f32.mrf.mxu0
  %v585 = vadd.f32 %v479, %v584
  %586 = vmatmul.f32.gmra.mxu0 %v460
  %v587 = vpop.f32.mrf.mxu0
  %v588 = vadd.f32 %v479, %v587
  %589 = vmatmul.f32.gmra.mxu0 %v461
  %v590 = vpop.f32.mrf.mxu0
  %v591 = vadd.f32 %v479, %v590
  %592 = vdwg.mxu0
  %593 = vmax.xlane.f32.xlu0 %v498
  %v594 = vpop.xlane.xlu0 %593
  %595 = vmax.xlane.f32.xlu0 %v501
  %v596 = vpop.xlane.xlu0 %595
  %597 = vmax.xlane.f32.xlu0 %v504
  %v598 = vpop.xlane.xlu0 %597
  %599 = vmax.xlane.f32.xlu0 %v507
  %v600 = vpop.xlane.xlu0 %599
  %601 = vmax.xlane.f32.xlu0 %v510
  %v602 = vpop.xlane.xlu0 %601
  %603 = vmax.xlane.f32.xlu0 %v513
  %v604 = vpop.xlane.xlu0 %603
  %605 = vmax.xlane.f32.xlu0 %v516
  %v606 = vpop.xlane.xlu0 %605
  %607 = vmax.xlane.f32.xlu0 %v519
  %v608 = vpop.xlane.xlu0 %607
  %609 = vmax.xlane.f32.xlu0 %v522
  %v610 = vpop.xlane.xlu0 %609
  %611 = vmax.xlane.f32.xlu0 %v525
  %v612 = vpop.xlane.xlu0 %611
  %613 = vmax.xlane.f32.xlu0 %v528
  %v614 = vpop.xlane.xlu0 %613
  %615 = vmax.xlane.f32.xlu0 %v531
  %v616 = vpop.xlane.xlu0 %615
  %617 = vmax.xlane.f32.xlu0 %v534
  %v618 = vpop.xlane.xlu0 %617
  %619 = vmax.xlane.f32.xlu0 %v537
  %v620 = vpop.xlane.xlu0 %619
  %621 = vmax.xlane.f32.xlu0 %v540
  %v622 = vpop.xlane.xlu0 %621
  %623 = vmax.xlane.f32.xlu0 %v543
  %v624 = vpop.xlane.xlu0 %623
  %625 = vmax.xlane.f32.xlu0 %v546
  %v626 = vpop.xlane.xlu0 %625
  %627 = vmax.xlane.f32.xlu0 %v549
  %v628 = vpop.xlane.xlu0 %627
  %629 = vmax.xlane.f32.xlu0 %v552
  %v630 = vpop.xlane.xlu0 %629
  %631 = vmax.xlane.f32.xlu0 %v555
  %v632 = vpop.xlane.xlu0 %631
  %633 = vmax.xlane.f32.xlu0 %v558
  %v634 = vpop.xlane.xlu0 %633
  %635 = vmax.xlane.f32.xlu0 %v561
  %v636 = vpop.xlane.xlu0 %635
  %637 = vmax.xlane.f32.xlu0 %v564
  %v638 = vpop.xlane.xlu0 %637
  %639 = vmax.xlane.f32.xlu0 %v567
  %v640 = vpop.xlane.xlu0 %639
  %641 = vmax.xlane.f32.xlu0 %v570
  %v642 = vpop.xlane.xlu0 %641
  %643 = vmax.xlane.f32.xlu0 %v573
  %v644 = vpop.xlane.xlu0 %643
  %645 = vmax.xlane.f32.xlu0 %v576
  %v646 = vpop.xlane.xlu0 %645
  %647 = vmax.xlane.f32.xlu0 %v579
  %v648 = vpop.xlane.xlu0 %647
  %649 = vmax.xlane.f32.xlu0 %v582
  %v650 = vpop.xlane.xlu0 %649
  %651 = vmax.xlane.f32.xlu0 %v585
  %v652 = vpop.xlane.xlu0 %651
  %653 = vmax.xlane.f32.xlu0 %v588
  %v654 = vpop.xlane.xlu0 %653
  %655 = vmax.xlane.f32.xlu0 %v591
  %v656 = vpop.xlane.xlu0 %655
  %v657 = vsub.f32 %v498, %v594
  %v658 = vsub.f32 %v501, %v596
  %v659 = vsub.f32 %v504, %v598
  %v660 = vsub.f32 %v507, %v600
  %v661 = vsub.f32 %v510, %v602
  %v662 = vsub.f32 %v513, %v604
  %v663 = vsub.f32 %v516, %v606
  %v664 = vsub.f32 %v519, %v608
  %v665 = vsub.f32 %v522, %v610
  %v666 = vsub.f32 %v525, %v612
  %v667 = vsub.f32 %v528, %v614
  %v668 = vsub.f32 %v531, %v616
  %v669 = vsub.f32 %v534, %v618
  %v670 = vsub.f32 %v537, %v620
  %v671 = vsub.f32 %v540, %v622
  %v672 = vsub.f32 %v543, %v624
  %v673 = vsub.f32 %v546, %v626
  %v674 = vsub.f32 %v549, %v628
  %v675 = vsub.f32 %v552, %v630
  %v676 = vsub.f32 %v555, %v632
  %v677 = vsub.f32 %v558, %v634
  %v678 = vsub.f32 %v561, %v636
  %v679 = vsub.f32 %v564, %v638
  %v680 = vsub.f32 %v567, %v640
  %v681 = vsub.f32 %v570, %v642
  %v682 = vsub.f32 %v573, %v644
  %v683 = vsub.f32 %v576, %v646
  %v684 = vsub.f32 %v579, %v648
  %v685 = vsub.f32 %v582, %v650
  %v686 = vsub.f32 %v585, %v652
  %v687 = vsub.f32 %v588, %v654
  %v688 = vsub.f32 %v591, %v656
  %v689 = vmul.f32 %v657, 1.442695
  %v690 = vpow.pop %v689
  %v691 = vmul.f32 %v658, 1.442695
  %v692 = vpow.pop %v691
  %v693 = vmul.f32 %v659, 1.442695
  %v694 = vpow.pop %v693
  %v695 = vmul.f32 %v660, 1.442695
  %v696 = vpow.pop %v695
  %v697 = vmul.f32 %v661, 1.442695
  %v698 = vpow.pop %v697
  %v699 = vmul.f32 %v662, 1.442695
  %v700 = vpow.pop %v699
  %v701 = vmul.f32 %v663, 1.442695
  %v702 = vpow.pop %v701
  %v703 = vmul.f32 %v664, 1.442695
  %v704 = vpow.pop %v703
  %v705 = vmul.f32 %v665, 1.442695
  %v706 = vpow.pop %v705
  %v707 = vmul.f32 %v666, 1.442695
  %v708 = vpow.pop %v707
  %v709 = vmul.f32 %v667, 1.442695
  %v710 = vpow.pop %v709
  %v711 = vmul.f32 %v668, 1.442695
  %v712 = vpow.pop %v711
  %v713 = vmul.f32 %v669, 1.442695
  %v714 = vpow.pop %v713
  %v715 = vmul.f32 %v670, 1.442695
  %v716 = vpow.pop %v715
  %v717 = vmul.f32 %v671, 1.442695
  %v718 = vpow.pop %v717
  %v719 = vmul.f32 %v672, 1.442695
  %v720 = vpow.pop %v719
  %v721 = vmul.f32 %v673, 1.442695
  %v722 = vpow.pop %v721
  %v723 = vmul.f32 %v674, 1.442695
  %v724 = vpow.pop %v723
  %v725 = vmul.f32 %v675, 1.442695
  %v726 = vpow.pop %v725
  %v727 = vmul.f32 %v676, 1.442695
  %v728 = vpow.pop %v727
  %v729 = vmul.f32 %v677, 1.442695
  %v730 = vpow.pop %v729
  %v731 = vmul.f32 %v678, 1.442695
  %v732 = vpow.pop %v731
  %v733 = vmul.f32 %v679, 1.442695
  %v734 = vpow.pop %v733
  %v735 = vmul.f32 %v680, 1.442695
  %v736 = vpow.pop %v735
  %v737 = vmul.f32 %v681, 1.442695
  %v738 = vpow.pop %v737
  %v739 = vmul.f32 %v682, 1.442695
  %v740 = vpow.pop %v739
  %v741 = vmul.f32 %v683, 1.442695
  %v742 = vpow.pop %v741
  %v743 = vmul.f32 %v684, 1.442695
  %v744 = vpow.pop %v743
  %v745 = vmul.f32 %v685, 1.442695
  %v746 = vpow.pop %v745
  %v747 = vmul.f32 %v686, 1.442695
  %v748 = vpow.pop %v747
  %v749 = vmul.f32 %v687, 1.442695
  %v750 = vpow.pop %v749
  %v751 = vmul.f32 %v688, 1.442695
  %v752 = vpow.pop %v751
  %753 = vadd.xlane.f32.xlu0 %v690
  %v754 = vpop.xlane.xlu0 %753
  %755 = vadd.xlane.f32.xlu0 %v692
  %v756 = vpop.xlane.xlu0 %755
  %757 = vadd.xlane.f32.xlu0 %v694
  %v758 = vpop.xlane.xlu0 %757
  %759 = vadd.xlane.f32.xlu0 %v696
  %v760 = vpop.xlane.xlu0 %759
  %761 = vadd.xlane.f32.xlu0 %v698
  %v762 = vpop.xlane.xlu0 %761
  %763 = vadd.xlane.f32.xlu0 %v700
  %v764 = vpop.xlane.xlu0 %763
  %765 = vadd.xlane.f32.xlu0 %v702
  %v766 = vpop.xlane.xlu0 %765
  %767 = vadd.xlane.f32.xlu0 %v704
  %v768 = vpop.xlane.xlu0 %767
  %769 = vadd.xlane.f32.xlu0 %v706
  %v770 = vpop.xlane.xlu0 %769
  %771 = vadd.xlane.f32.xlu0 %v708
  %v772 = vpop.xlane.xlu0 %771
  %773 = vadd.xlane.f32.xlu0 %v710
  %v774 = vpop.xlane.xlu0 %773
  %775 = vadd.xlane.f32.xlu0 %v712
  %v776 = vpop.xlane.xlu0 %775
  %777 = vadd.xlane.f32.xlu0 %v714
  %v778 = vpop.xlane.xlu0 %777
  %779 = vadd.xlane.f32.xlu0 %v716
  %v780 = vpop.xlane.xlu0 %779
  %781 = vadd.xlane.f32.xlu0 %v718
  %v782 = vpop.xlane.xlu0 %781
  %783 = vadd.xlane.f32.xlu0 %v720
  %v784 = vpop.xlane.xlu0 %783
  %785 = vadd.xlane.f32.xlu0 %v722
  %v786 = vpop.xlane.xlu0 %785
  %787 = vadd.xlane.f32.xlu0 %v724
  %v788 = vpop.xlane.xlu0 %787
  %789 = vadd.xlane.f32.xlu0 %v726
  %v790 = vpop.xlane.xlu0 %789
  %791 = vadd.xlane.f32.xlu0 %v728
  %v792 = vpop.xlane.xlu0 %791
  %793 = vadd.xlane.f32.xlu0 %v730
  %v794 = vpop.xlane.xlu0 %793
  %795 = vadd.xlane.f32.xlu0 %v732
  %v796 = vpop.xlane.xlu0 %795
  %797 = vadd.xlane.f32.xlu0 %v734
  %v798 = vpop.xlane.xlu0 %797
  %799 = vadd.xlane.f32.xlu0 %v736
  %v800 = vpop.xlane.xlu0 %799
  %801 = vadd.xlane.f32.xlu0 %v738
  %v802 = vpop.xlane.xlu0 %801
  %803 = vadd.xlane.f32.xlu0 %v740
  %v804 = vpop.xlane.xlu0 %803
  %805 = vadd.xlane.f32.xlu0 %v742
  %v806 = vpop.xlane.xlu0 %805
  %807 = vadd.xlane.f32.xlu0 %v744
  %v808 = vpop.xlane.xlu0 %807
  %809 = vadd.xlane.f32.xlu0 %v746
  %v810 = vpop.xlane.xlu0 %809
  %811 = vadd.xlane.f32.xlu0 %v748
  %v812 = vpop.xlane.xlu0 %811
  %813 = vadd.xlane.f32.xlu0 %v750
  %v814 = vpop.xlane.xlu0 %813
  %815 = vadd.xlane.f32.xlu0 %v752
  %v816 = vpop.xlane.xlu0 %815
  %v817 = vrcp.pop %v754
  %v818 = vmul.f32 %v754, %v817
  %v819 = vsub.f32 1.0, %v818
  %v820 = vmul.f32 %v817, %v819
  %v821 = vadd.f32 %v817, %v820
  %vm822 = vweird.f32 %v754
  %vm823 = vweird.f32 %v817
  %vm824 = vmor %vm822, %vm823
  %v825 = vsel %vm824, %v817, %v821
  %v826 = vand.u32 2147483647, %v754
  %vm827 = vcmp.eq.f32.partialorder %v826, 8.507059e+37
  %v828 = vand.u32 %v754, 2147483648
  %v829 = vor.u32 1.1754944e-38, %v828
  %v830 = vsel %vm827, %v829, %v825
  %v831 = vmul.f32 %v690, %v830
  %v832 = vrcp.pop %v756
  %v833 = vmul.f32 %v756, %v832
  %v834 = vsub.f32 1.0, %v833
  %v835 = vmul.f32 %v832, %v834
  %v836 = vadd.f32 %v832, %v835
  %vm837 = vweird.f32 %v756
  %vm838 = vweird.f32 %v832
  %vm839 = vmor %vm837, %vm838
  %v840 = vsel %vm839, %v832, %v836
  %v841 = vand.u32 2147483647, %v756
  %vm842 = vcmp.eq.f32.partialorder %v841, 8.507059e+37
  %v843 = vand.u32 %v756, 2147483648
  %v844 = vor.u32 1.1754944e-38, %v843
  %v845 = vsel %vm842, %v844, %v840
  %v846 = vmul.f32 %v692, %v845
  %v847 = vrcp.pop %v758
  %v848 = vmul.f32 %v758, %v847
  %v849 = vsub.f32 1.0, %v848
  %v850 = vmul.f32 %v847, %v849
  %v851 = vadd.f32 %v847, %v850
  %vm852 = vweird.f32 %v758
  %vm853 = vweird.f32 %v847
  %vm854 = vmor %vm852, %vm853
  %v855 = vsel %vm854, %v847, %v851
  %v856 = vand.u32 2147483647, %v758
  %vm857 = vcmp.eq.f32.partialorder %v856, 8.507059e+37
  %v858 = vand.u32 %v758, 2147483648
  %v859 = vor.u32 1.1754944e-38, %v858
  %v860 = vsel %vm857, %v859, %v855
  %v861 = vmul.f32 %v694, %v860
  %v862 = vrcp.pop %v760
  %v863 = vmul.f32 %v760, %v862
  %v864 = vsub.f32 1.0, %v863
  %v865 = vmul.f32 %v862, %v864
  %v866 = vadd.f32 %v862, %v865
  %vm867 = vweird.f32 %v760
  %vm868 = vweird.f32 %v862
  %vm869 = vmor %vm867, %vm868
  %v870 = vsel %vm869, %v862, %v866
  %v871 = vand.u32 2147483647, %v760
  %vm872 = vcmp.eq.f32.partialorder %v871, 8.507059e+37
  %v873 = vand.u32 %v760, 2147483648
  %v874 = vor.u32 1.1754944e-38, %v873
  %v875 = vsel %vm872, %v874, %v870
  %v876 = vmul.f32 %v696, %v875
  %v877 = vrcp.pop %v762
  %v878 = vmul.f32 %v762, %v877
  %v879 = vsub.f32 1.0, %v878
  %v880 = vmul.f32 %v877, %v879
  %v881 = vadd.f32 %v877, %v880
  %vm882 = vweird.f32 %v762
  %vm883 = vweird.f32 %v877
  %vm884 = vmor %vm882, %vm883
  %v885 = vsel %vm884, %v877, %v881
  %v886 = vand.u32 2147483647, %v762
  %vm887 = vcmp.eq.f32.partialorder %v886, 8.507059e+37
  %v888 = vand.u32 %v762, 2147483648
  %v889 = vor.u32 1.1754944e-38, %v888
  %v890 = vsel %vm887, %v889, %v885
  %v891 = vmul.f32 %v698, %v890
  %v892 = vrcp.pop %v764
  %v893 = vmul.f32 %v764, %v892
  %v894 = vsub.f32 1.0, %v893
  %v895 = vmul.f32 %v892, %v894
  %v896 = vadd.f32 %v892, %v895
  %vm897 = vweird.f32 %v764
  %vm898 = vweird.f32 %v892
  %vm899 = vmor %vm897, %vm898
  %v900 = vsel %vm899, %v892, %v896
  %v901 = vand.u32 2147483647, %v764
  %vm902 = vcmp.eq.f32.partialorder %v901, 8.507059e+37
  %v903 = vand.u32 %v764, 2147483648
  %v904 = vor.u32 1.1754944e-38, %v903
  %v905 = vsel %vm902, %v904, %v900
  %v906 = vmul.f32 %v700, %v905
  %v907 = vrcp.pop %v766
  %v908 = vmul.f32 %v766, %v907
  %v909 = vsub.f32 1.0, %v908
  %v910 = vmul.f32 %v907, %v909
  %v911 = vadd.f32 %v907, %v910
  %vm912 = vweird.f32 %v766
  %vm913 = vweird.f32 %v907
  %vm914 = vmor %vm912, %vm913
  %v915 = vsel %vm914, %v907, %v911
  %v916 = vand.u32 2147483647, %v766
  %vm917 = vcmp.eq.f32.partialorder %v916, 8.507059e+37
  %v918 = vand.u32 %v766, 2147483648
  %v919 = vor.u32 1.1754944e-38, %v918
  %v920 = vsel %vm917, %v919, %v915
  %v921 = vmul.f32 %v702, %v920
  %v922 = vrcp.pop %v768
  %v923 = vmul.f32 %v768, %v922
  %v924 = vsub.f32 1.0, %v923
  %v925 = vmul.f32 %v922, %v924
  %v926 = vadd.f32 %v922, %v925
  %vm927 = vweird.f32 %v768
  %vm928 = vweird.f32 %v922
  %vm929 = vmor %vm927, %vm928
  %v930 = vsel %vm929, %v922, %v926
  %v931 = vand.u32 2147483647, %v768
  %vm932 = vcmp.eq.f32.partialorder %v931, 8.507059e+37
  %v933 = vand.u32 %v768, 2147483648
  %v934 = vor.u32 1.1754944e-38, %v933
  %v935 = vsel %vm932, %v934, %v930
  %v936 = vmul.f32 %v704, %v935
  %v937 = vrcp.pop %v770
  %v938 = vmul.f32 %v770, %v937
  %v939 = vsub.f32 1.0, %v938
  %v940 = vmul.f32 %v937, %v939
  %v941 = vadd.f32 %v937, %v940
  %vm942 = vweird.f32 %v770
  %vm943 = vweird.f32 %v937
  %vm944 = vmor %vm942, %vm943
  %v945 = vsel %vm944, %v937, %v941
  %v946 = vand.u32 2147483647, %v770
  %vm947 = vcmp.eq.f32.partialorder %v946, 8.507059e+37
  %v948 = vand.u32 %v770, 2147483648
  %v949 = vor.u32 1.1754944e-38, %v948
  %v950 = vsel %vm947, %v949, %v945
  %v951 = vmul.f32 %v706, %v950
  %v952 = vrcp.pop %v772
  %v953 = vmul.f32 %v772, %v952
  %v954 = vsub.f32 1.0, %v953
  %v955 = vmul.f32 %v952, %v954
  %v956 = vadd.f32 %v952, %v955
  %vm957 = vweird.f32 %v772
  %vm958 = vweird.f32 %v952
  %vm959 = vmor %vm957, %vm958
  %v960 = vsel %vm959, %v952, %v956
  %v961 = vand.u32 2147483647, %v772
  %vm962 = vcmp.eq.f32.partialorder %v961, 8.507059e+37
  %v963 = vand.u32 %v772, 2147483648
  %v964 = vor.u32 1.1754944e-38, %v963
  %v965 = vsel %vm962, %v964, %v960
  %v966 = vmul.f32 %v708, %v965
  %v967 = vrcp.pop %v774
  %v968 = vmul.f32 %v774, %v967
  %v969 = vsub.f32 1.0, %v968
  %v970 = vmul.f32 %v967, %v969
  %v971 = vadd.f32 %v967, %v970
  %vm972 = vweird.f32 %v774
  %vm973 = vweird.f32 %v967
  %vm974 = vmor %vm972, %vm973
  %v975 = vsel %vm974, %v967, %v971
  %v976 = vand.u32 2147483647, %v774
  %vm977 = vcmp.eq.f32.partialorder %v976, 8.507059e+37
  %v978 = vand.u32 %v774, 2147483648
  %v979 = vor.u32 1.1754944e-38, %v978
  %v980 = vsel %vm977, %v979, %v975
  %v981 = vmul.f32 %v710, %v980
  %v982 = vrcp.pop %v776
  %v983 = vmul.f32 %v776, %v982
  %v984 = vsub.f32 1.0, %v983
  %v985 = vmul.f32 %v982, %v984
  %v986 = vadd.f32 %v982, %v985
  %vm987 = vweird.f32 %v776
  %vm988 = vweird.f32 %v982
  %vm989 = vmor %vm987, %vm988
  %v990 = vsel %vm989, %v982, %v986
  %v991 = vand.u32 2147483647, %v776
  %vm992 = vcmp.eq.f32.partialorder %v991, 8.507059e+37
  %v993 = vand.u32 %v776, 2147483648
  %v994 = vor.u32 1.1754944e-38, %v993
  %v995 = vsel %vm992, %v994, %v990
  %v996 = vmul.f32 %v712, %v995
  %v997 = vrcp.pop %v778
  %v998 = vmul.f32 %v778, %v997
  %v999 = vsub.f32 1.0, %v998
  %v1000 = vmul.f32 %v997, %v999
  %v1001 = vadd.f32 %v997, %v1000
  %vm1002 = vweird.f32 %v778
  %vm1003 = vweird.f32 %v997
  %vm1004 = vmor %vm1002, %vm1003
  %v1005 = vsel %vm1004, %v997, %v1001
  %v1006 = vand.u32 2147483647, %v778
  %vm1007 = vcmp.eq.f32.partialorder %v1006, 8.507059e+37
  %v1008 = vand.u32 %v778, 2147483648
  %v1009 = vor.u32 1.1754944e-38, %v1008
  %v1010 = vsel %vm1007, %v1009, %v1005
  %v1011 = vmul.f32 %v714, %v1010
  %v1012 = vrcp.pop %v780
  %v1013 = vmul.f32 %v780, %v1012
  %v1014 = vsub.f32 1.0, %v1013
  %v1015 = vmul.f32 %v1012, %v1014
  %v1016 = vadd.f32 %v1012, %v1015
  %vm1017 = vweird.f32 %v780
  %vm1018 = vweird.f32 %v1012
  %vm1019 = vmor %vm1017, %vm1018
  %v1020 = vsel %vm1019, %v1012, %v1016
  %v1021 = vand.u32 2147483647, %v780
  %vm1022 = vcmp.eq.f32.partialorder %v1021, 8.507059e+37
  %v1023 = vand.u32 %v780, 2147483648
  %v1024 = vor.u32 1.1754944e-38, %v1023
  %v1025 = vsel %vm1022, %v1024, %v1020
  %v1026 = vmul.f32 %v716, %v1025
  %v1027 = vrcp.pop %v782
  %v1028 = vmul.f32 %v782, %v1027
  %v1029 = vsub.f32 1.0, %v1028
  %v1030 = vmul.f32 %v1027, %v1029
  %v1031 = vadd.f32 %v1027, %v1030
  %vm1032 = vweird.f32 %v782
  %vm1033 = vweird.f32 %v1027
  %vm1034 = vmor %vm1032, %vm1033
  %v1035 = vsel %vm1034, %v1027, %v1031
  %v1036 = vand.u32 2147483647, %v782
  %vm1037 = vcmp.eq.f32.partialorder %v1036, 8.507059e+37
  %v1038 = vand.u32 %v782, 2147483648
  %v1039 = vor.u32 1.1754944e-38, %v1038
  %v1040 = vsel %vm1037, %v1039, %v1035
  %v1041 = vmul.f32 %v718, %v1040
  %v1042 = vrcp.pop %v784
  %v1043 = vmul.f32 %v784, %v1042
  %v1044 = vsub.f32 1.0, %v1043
  %v1045 = vmul.f32 %v1042, %v1044
  %v1046 = vadd.f32 %v1042, %v1045
  %vm1047 = vweird.f32 %v784
  %vm1048 = vweird.f32 %v1042
  %vm1049 = vmor %vm1047, %vm1048
  %v1050 = vsel %vm1049, %v1042, %v1046
  %v1051 = vand.u32 2147483647, %v784
  %vm1052 = vcmp.eq.f32.partialorder %v1051, 8.507059e+37
  %v1053 = vand.u32 %v784, 2147483648
  %v1054 = vor.u32 1.1754944e-38, %v1053
  %v1055 = vsel %vm1052, %v1054, %v1050
  %v1056 = vmul.f32 %v720, %v1055
  %v1057 = vrcp.pop %v786
  %v1058 = vmul.f32 %v786, %v1057
  %v1059 = vsub.f32 1.0, %v1058
  %v1060 = vmul.f32 %v1057, %v1059
  %v1061 = vadd.f32 %v1057, %v1060
  %vm1062 = vweird.f32 %v786
  %vm1063 = vweird.f32 %v1057
  %vm1064 = vmor %vm1062, %vm1063
  %v1065 = vsel %vm1064, %v1057, %v1061
  %v1066 = vand.u32 2147483647, %v786
  %vm1067 = vcmp.eq.f32.partialorder %v1066, 8.507059e+37
  %v1068 = vand.u32 %v786, 2147483648
  %v1069 = vor.u32 1.1754944e-38, %v1068
  %v1070 = vsel %vm1067, %v1069, %v1065
  %v1071 = vmul.f32 %v722, %v1070
  %v1072 = vrcp.pop %v788
  %v1073 = vmul.f32 %v788, %v1072
  %v1074 = vsub.f32 1.0, %v1073
  %v1075 = vmul.f32 %v1072, %v1074
  %v1076 = vadd.f32 %v1072, %v1075
  %vm1077 = vweird.f32 %v788
  %vm1078 = vweird.f32 %v1072
  %vm1079 = vmor %vm1077, %vm1078
  %v1080 = vsel %vm1079, %v1072, %v1076
  %v1081 = vand.u32 2147483647, %v788
  %vm1082 = vcmp.eq.f32.partialorder %v1081, 8.507059e+37
  %v1083 = vand.u32 %v788, 2147483648
  %v1084 = vor.u32 1.1754944e-38, %v1083
  %v1085 = vsel %vm1082, %v1084, %v1080
  %v1086 = vmul.f32 %v724, %v1085
  %v1087 = vrcp.pop %v790
  %v1088 = vmul.f32 %v790, %v1087
  %v1089 = vsub.f32 1.0, %v1088
  %v1090 = vmul.f32 %v1087, %v1089
  %v1091 = vadd.f32 %v1087, %v1090
  %vm1092 = vweird.f32 %v790
  %vm1093 = vweird.f32 %v1087
  %vm1094 = vmor %vm1092, %vm1093
  %v1095 = vsel %vm1094, %v1087, %v1091
  %v1096 = vand.u32 2147483647, %v790
  %vm1097 = vcmp.eq.f32.partialorder %v1096, 8.507059e+37
  %v1098 = vand.u32 %v790, 2147483648
  %v1099 = vor.u32 1.1754944e-38, %v1098
  %v1100 = vsel %vm1097, %v1099, %v1095
  %v1101 = vmul.f32 %v726, %v1100
  %v1102 = vrcp.pop %v792
  %v1103 = vmul.f32 %v792, %v1102
  %v1104 = vsub.f32 1.0, %v1103
  %v1105 = vmul.f32 %v1102, %v1104
  %v1106 = vadd.f32 %v1102, %v1105
  %vm1107 = vweird.f32 %v792
  %vm1108 = vweird.f32 %v1102
  %vm1109 = vmor %vm1107, %vm1108
  %v1110 = vsel %vm1109, %v1102, %v1106
  %v1111 = vand.u32 2147483647, %v792
  %vm1112 = vcmp.eq.f32.partialorder %v1111, 8.507059e+37
  %v1113 = vand.u32 %v792, 2147483648
  %v1114 = vor.u32 1.1754944e-38, %v1113
  %v1115 = vsel %vm1112, %v1114, %v1110
  %v1116 = vmul.f32 %v728, %v1115
  %v1117 = vrcp.pop %v794
  %v1118 = vmul.f32 %v794, %v1117
  %v1119 = vsub.f32 1.0, %v1118
  %v1120 = vmul.f32 %v1117, %v1119
  %v1121 = vadd.f32 %v1117, %v1120
  %vm1122 = vweird.f32 %v794
  %vm1123 = vweird.f32 %v1117
  %vm1124 = vmor %vm1122, %vm1123
  %v1125 = vsel %vm1124, %v1117, %v1121
  %v1126 = vand.u32 2147483647, %v794
  %vm1127 = vcmp.eq.f32.partialorder %v1126, 8.507059e+37
  %v1128 = vand.u32 %v794, 2147483648
  %v1129 = vor.u32 1.1754944e-38, %v1128
  %v1130 = vsel %vm1127, %v1129, %v1125
  %v1131 = vmul.f32 %v730, %v1130
  %v1132 = vrcp.pop %v796
  %v1133 = vmul.f32 %v796, %v1132
  %v1134 = vsub.f32 1.0, %v1133
  %v1135 = vmul.f32 %v1132, %v1134
  %v1136 = vadd.f32 %v1132, %v1135
  %vm1137 = vweird.f32 %v796
  %vm1138 = vweird.f32 %v1132
  %vm1139 = vmor %vm1137, %vm1138
  %v1140 = vsel %vm1139, %v1132, %v1136
  %v1141 = vand.u32 2147483647, %v796
  %vm1142 = vcmp.eq.f32.partialorder %v1141, 8.507059e+37
  %v1143 = vand.u32 %v796, 2147483648
  %v1144 = vor.u32 1.1754944e-38, %v1143
  %v1145 = vsel %vm1142, %v1144, %v1140
  %v1146 = vmul.f32 %v732, %v1145
  %v1147 = vrcp.pop %v798
  %v1148 = vmul.f32 %v798, %v1147
  %v1149 = vsub.f32 1.0, %v1148
  %v1150 = vmul.f32 %v1147, %v1149
  %v1151 = vadd.f32 %v1147, %v1150
  %vm1152 = vweird.f32 %v798
  %vm1153 = vweird.f32 %v1147
  %vm1154 = vmor %vm1152, %vm1153
  %v1155 = vsel %vm1154, %v1147, %v1151
  %v1156 = vand.u32 2147483647, %v798
  %vm1157 = vcmp.eq.f32.partialorder %v1156, 8.507059e+37
  %v1158 = vand.u32 %v798, 2147483648
  %v1159 = vor.u32 1.1754944e-38, %v1158
  %v1160 = vsel %vm1157, %v1159, %v1155
  %v1161 = vmul.f32 %v734, %v1160
  %v1162 = vrcp.pop %v800
  %v1163 = vmul.f32 %v800, %v1162
  %v1164 = vsub.f32 1.0, %v1163
  %v1165 = vmul.f32 %v1162, %v1164
  %v1166 = vadd.f32 %v1162, %v1165
  %vm1167 = vweird.f32 %v800
  %vm1168 = vweird.f32 %v1162
  %vm1169 = vmor %vm1167, %vm1168
  %v1170 = vsel %vm1169, %v1162, %v1166
  %v1171 = vand.u32 2147483647, %v800
  %vm1172 = vcmp.eq.f32.partialorder %v1171, 8.507059e+37
  %v1173 = vand.u32 %v800, 2147483648
  %v1174 = vor.u32 1.1754944e-38, %v1173
  %v1175 = vsel %vm1172, %v1174, %v1170
  %v1176 = vmul.f32 %v736, %v1175
  %v1177 = vrcp.pop %v802
  %v1178 = vmul.f32 %v802, %v1177
  %v1179 = vsub.f32 1.0, %v1178
  %v1180 = vmul.f32 %v1177, %v1179
  %v1181 = vadd.f32 %v1177, %v1180
  %vm1182 = vweird.f32 %v802
  %vm1183 = vweird.f32 %v1177
  %vm1184 = vmor %vm1182, %vm1183
  %v1185 = vsel %vm1184, %v1177, %v1181
  %v1186 = vand.u32 2147483647, %v802
  %vm1187 = vcmp.eq.f32.partialorder %v1186, 8.507059e+37
  %v1188 = vand.u32 %v802, 2147483648
  %v1189 = vor.u32 1.1754944e-38, %v1188
  %v1190 = vsel %vm1187, %v1189, %v1185
  %v1191 = vmul.f32 %v738, %v1190
  %v1192 = vrcp.pop %v804
  %v1193 = vmul.f32 %v804, %v1192
  %v1194 = vsub.f32 1.0, %v1193
  %v1195 = vmul.f32 %v1192, %v1194
  %v1196 = vadd.f32 %v1192, %v1195
  %vm1197 = vweird.f32 %v804
  %vm1198 = vweird.f32 %v1192
  %vm1199 = vmor %vm1197, %vm1198
  %v1200 = vsel %vm1199, %v1192, %v1196
  %v1201 = vand.u32 2147483647, %v804
  %vm1202 = vcmp.eq.f32.partialorder %v1201, 8.507059e+37
  %v1203 = vand.u32 %v804, 2147483648
  %v1204 = vor.u32 1.1754944e-38, %v1203
  %v1205 = vsel %vm1202, %v1204, %v1200
  %v1206 = vmul.f32 %v740, %v1205
  %v1207 = vrcp.pop %v806
  %v1208 = vmul.f32 %v806, %v1207
  %v1209 = vsub.f32 1.0, %v1208
  %v1210 = vmul.f32 %v1207, %v1209
  %v1211 = vadd.f32 %v1207, %v1210
  %vm1212 = vweird.f32 %v806
  %vm1213 = vweird.f32 %v1207
  %vm1214 = vmor %vm1212, %vm1213
  %v1215 = vsel %vm1214, %v1207, %v1211
  %v1216 = vand.u32 2147483647, %v806
  %vm1217 = vcmp.eq.f32.partialorder %v1216, 8.507059e+37
  %v1218 = vand.u32 %v806, 2147483648
  %v1219 = vor.u32 1.1754944e-38, %v1218
  %v1220 = vsel %vm1217, %v1219, %v1215
  %v1221 = vmul.f32 %v742, %v1220
  %v1222 = vrcp.pop %v808
  %v1223 = vmul.f32 %v808, %v1222
  %v1224 = vsub.f32 1.0, %v1223
  %v1225 = vmul.f32 %v1222, %v1224
  %v1226 = vadd.f32 %v1222, %v1225
  %vm1227 = vweird.f32 %v808
  %vm1228 = vweird.f32 %v1222
  %vm1229 = vmor %vm1227, %vm1228
  %v1230 = vsel %vm1229, %v1222, %v1226
  %v1231 = vand.u32 2147483647, %v808
  %vm1232 = vcmp.eq.f32.partialorder %v1231, 8.507059e+37
  %v1233 = vand.u32 %v808, 2147483648
  %v1234 = vor.u32 1.1754944e-38, %v1233
  %v1235 = vsel %vm1232, %v1234, %v1230
  %v1236 = vmul.f32 %v744, %v1235
  %v1237 = vrcp.pop %v810
  %v1238 = vmul.f32 %v810, %v1237
  %v1239 = vsub.f32 1.0, %v1238
  %v1240 = vmul.f32 %v1237, %v1239
  %v1241 = vadd.f32 %v1237, %v1240
  %vm1242 = vweird.f32 %v810
  %vm1243 = vweird.f32 %v1237
  %vm1244 = vmor %vm1242, %vm1243
  %v1245 = vsel %vm1244, %v1237, %v1241
  %v1246 = vand.u32 2147483647, %v810
  %vm1247 = vcmp.eq.f32.partialorder %v1246, 8.507059e+37
  %v1248 = vand.u32 %v810, 2147483648
  %v1249 = vor.u32 1.1754944e-38, %v1248
  %v1250 = vsel %vm1247, %v1249, %v1245
  %v1251 = vmul.f32 %v746, %v1250
  %v1252 = vrcp.pop %v812
  %v1253 = vmul.f32 %v812, %v1252
  %v1254 = vsub.f32 1.0, %v1253
  %v1255 = vmul.f32 %v1252, %v1254
  %v1256 = vadd.f32 %v1252, %v1255
  %vm1257 = vweird.f32 %v812
  %vm1258 = vweird.f32 %v1252
  %vm1259 = vmor %vm1257, %vm1258
  %v1260 = vsel %vm1259, %v1252, %v1256
  %v1261 = vand.u32 2147483647, %v812
  %vm1262 = vcmp.eq.f32.partialorder %v1261, 8.507059e+37
  %v1263 = vand.u32 %v812, 2147483648
  %v1264 = vor.u32 1.1754944e-38, %v1263
  %v1265 = vsel %vm1262, %v1264, %v1260
  %v1266 = vmul.f32 %v748, %v1265
  %v1267 = vrcp.pop %v814
  %v1268 = vmul.f32 %v814, %v1267
  %v1269 = vsub.f32 1.0, %v1268
  %v1270 = vmul.f32 %v1267, %v1269
  %v1271 = vadd.f32 %v1267, %v1270
  %vm1272 = vweird.f32 %v814
  %vm1273 = vweird.f32 %v1267
  %vm1274 = vmor %vm1272, %vm1273
  %v1275 = vsel %vm1274, %v1267, %v1271
  %v1276 = vand.u32 2147483647, %v814
  %vm1277 = vcmp.eq.f32.partialorder %v1276, 8.507059e+37
  %v1278 = vand.u32 %v814, 2147483648
  %v1279 = vor.u32 1.1754944e-38, %v1278
  %v1280 = vsel %vm1277, %v1279, %v1275
  %v1281 = vmul.f32 %v750, %v1280
  %v1282 = vrcp.pop %v816
  %v1283 = vmul.f32 %v816, %v1282
  %v1284 = vsub.f32 1.0, %v1283
  %v1285 = vmul.f32 %v1282, %v1284
  %v1286 = vadd.f32 %v1282, %v1285
  %vm1287 = vweird.f32 %v816
  %vm1288 = vweird.f32 %v1282
  %vm1289 = vmor %vm1287, %vm1288
  %v1290 = vsel %vm1289, %v1282, %v1286
  %v1291 = vand.u32 2147483647, %v816
  %vm1292 = vcmp.eq.f32.partialorder %v1291, 8.507059e+37
  %v1293 = vand.u32 %v816, 2147483648
  %v1294 = vor.u32 1.1754944e-38, %v1293
  %v1295 = vsel %vm1292, %v1294, %v1290
  %v1296 = vmul.f32 %v752, %v1295
  %1297 = vst [vmem:[%s4] sm:$0xff] %v831
  %1298 = vst [vmem:[%s4 + $0x8] sm:$0xff] %v846
  %1299 = vst [vmem:[%s4 + $0x10] sm:$0xff] %v861
  %1300 = vst [vmem:[%s4 + $0x18] sm:$0xff] %v876
  %1301 = vst [vmem:[%s4 + $0x20] sm:$0xff] %v891
  %1302 = vst [vmem:[%s4 + $0x28] sm:$0xff] %v906
  %1303 = vst [vmem:[%s4 + $0x30] sm:$0xff] %v921
  %1304 = vst [vmem:[%s4 + $0x38] sm:$0xff] %v936
  %1305 = vst [vmem:[%s4 + $0x40] sm:$0xff] %v951
  %1306 = vst [vmem:[%s4 + $0x48] sm:$0xff] %v966
  %1307 = vst [vmem:[%s4 + $0x50] sm:$0xff] %v981
  %1308 = vst [vmem:[%s4 + $0x58] sm:$0xff] %v996
  %1309 = vst [vmem:[%s4 + $0x60] sm:$0xff] %v1011
  %1310 = vst [vmem:[%s4 + $0x68] sm:$0xff] %v1026
  %1311 = vst [vmem:[%s4 + $0x70] sm:$0xff] %v1041
  %1312 = vst [vmem:[%s4 + $0x78] sm:$0xff] %v1056
  %1313 = vst [vmem:[%s4 + $0x80] sm:$0xff] %v1071
  %1314 = vst [vmem:[%s4 + $0x88] sm:$0xff] %v1086
  %1315 = vst [vmem:[%s4 + $0x90] sm:$0xff] %v1101
  %1316 = vst [vmem:[%s4 + $0x98] sm:$0xff] %v1116
  %1317 = vst [vmem:[%s4 + $0xa0] sm:$0xff] %v1131
  %1318 = vst [vmem:[%s4 + $0xa8] sm:$0xff] %v1146
  %1319 = vst [vmem:[%s4 + $0xb0] sm:$0xff] %v1161
  %1320 = vst [vmem:[%s4 + $0xb8] sm:$0xff] %v1176
  %1321 = vst [vmem:[%s4 + $0xc0] sm:$0xff] %v1191
  %1322 = vst [vmem:[%s4 + $0xc8] sm:$0xff] %v1206
  %1323 = vst [vmem:[%s4 + $0xd0] sm:$0xff] %v1221
  %1324 = vst [vmem:[%s4 + $0xd8] sm:$0xff] %v1236
  %1325 = vst [vmem:[%s4 + $0xe0] sm:$0xff] %v1251
  %1326 = vst [vmem:[%s4 + $0xe8] sm:$0xff] %v1266
  %1327 = vst [vmem:[%s4 + $0xf0] sm:$0xff] %v1281
  %1328 = vst [vmem:[%s4 + $0xf8] sm:$0xff] %v1296
  // Predicated region
  $region18: #{network_forward.1} parent=0 // pred_check
    _
  $region19: #{network_forward.1} parent=0 // pred_check_branch
    %1330 = sbr.rel (0) target = $region21
  $region20: #{network_forward.1} parent=0 // pred_region
    _
  $region21: #{network_forward.1} parent=0 // pred_fallthru
    _
  // Predicated region
  $region22: #{network_forward.1} parent=0 // pred_check
    _
  $region23: #{network_forward.1} parent=0 // pred_check_branch
    %1332 = sbr.rel (0) target = $region25
  $region24: #{network_forward.1} parent=0 // pred_region
    _
  $region25: #{network_forward.1} parent=0 // pred_fallthru
    _

</llo_original>
